<compile_context>
chip_gen: v7x
topology: tpu7x:2x2x1
jax: 0.10.0
libtpu: 0.0.40
codegen_flags: <defaults>
</compile_context>

<pallas_src>
import math
from functools import partial

import numpy as np
import jax
import jax.numpy as jnp
from jax.experimental import pallas as pl
from jax.experimental.pallas import tpu as pltpu


def _lane_group_sum(v, W, Cout):
    """v: (1, W*Cout) lane-packed as (w, c) with c fastest.  Returns (1, W*Cout)
    where every lane holds the sum over all w of its channel c (per-channel total,
    already broadcast to every lane).  XLU lane rotations only."""
    if W & (W - 1) == 0:                      # power of two: log cascade
        t = v
        s = (W // 2) * Cout
        while s >= Cout:
            t = t + pltpu.roll(t, shift=s, axis=1)
            s //= 2
        return t
    t = v
    for k in range(1, W):
        t = t + pltpu.roll(v, shift=k * Cout, axis=1)
    return t


def _custom_block_kernel(x_ref, a_ref, b3_ref, gamma_ref, beta_ref, w1_ref, b1_ref,
                         out_ref, cache_ref, stats_ref,
                         *, eps, B, H, W, Cout, inv_count):
    # x_ref   : (B, H+2, W*Cin)  B images, height-padded, lane-packed (w, ci)
    # a_ref   : (3, W*Cin, W*Cout) structured 3x3-conv weights (dx taps + width halo folded in)
    # b3/gamma/beta/b1_ref : (1, W*Cout) per-channel params tiled across w
    # w1_ref  : (W*Cout, W*Cout) kron(I_W, w1) block-diagonal 1x1-conv weight
    # out_ref : (B, H, W*Cout)   lane-dense output tile
    # cache_ref : (N*H, W*Cout) f32 VMEM  persistent conv cache (phase 0 -> phase 1)
    # stats_ref : (8, W*Cout)  f32 VMEM  row 0 = mean, row 1 = rstd (lane-broadcast)
    phase = pl.program_id(0)          # 0: conv + cache, 1: stats + apply
    n = pl.program_id(1)              # image-block index
    WCin = x_ref.shape[2]
    WCout = out_ref.shape[2]
    BH = B * H
    start = pl.multiple_of(n * BH, BH)

    # ---- phase 0: 3x3 conv (3 lane-dense matmuls, M = B*H rows), cache in VMEM ----
    @pl.when(phase == 0)
    def _conv_and_cache():
        x = x_ref[...]                                            # (B, Hp, WCin)

        def tap(dy):
            return x[:, dy:dy + H, :].reshape(BH, WCin)

        conv = jnp.dot(tap(0), a_ref[0], preferred_element_type=jnp.float32)
        conv = conv + jnp.dot(tap(1), a_ref[1], preferred_element_type=jnp.float32)
        conv = conv + jnp.dot(tap(2), a_ref[2], preferred_element_type=jnp.float32)
        conv = conv + b3_ref[...]                                 # (BH, WCout)
        cache_ref[pl.ds(start, BH), :] = conv

    # ---- phase 1, first block: two-pass BN batch stats from the VMEM cache ----
    @pl.when((phase == 1) & (n == 0))
    def _finalize_stats():
        cache = cache_ref[...]                                    # (N*H, WCout)
        s = jnp.sum(cache, axis=0, keepdims=True)                 # per-lane sums
        mean = _lane_group_sum(s, W, Cout) * inv_count            # per-channel, lane-broadcast
        d = cache - mean
        v = jnp.sum(d * d, axis=0, keepdims=True)
        var = _lane_group_sum(v, W, Cout) * inv_count             # biased var (train mode)
        stats_ref[0:1, :] = mean
        stats_ref[1:2, :] = jax.lax.rsqrt(var + eps)

    # ---- phase 1: BN affine -> GELU(erf) -> 1x1 conv -> sigmoid gate (lane-dense) ----
    @pl.when(phase == 1)
    def _apply():
        conv = cache_ref[pl.ds(start, BH), :]                     # (BH, WCout)
        mean = stats_ref[0:1, :]
        rstd = stats_ref[1:2, :]
        y = (conv - mean) * rstd * gamma_ref[...] + beta_ref[...]
        g = 0.5 * y * (1.0 + jax.lax.erf(y * (1.0 / math.sqrt(2.0))))
        z = jnp.dot(g, w1_ref[...], preferred_element_type=jnp.float32) + b1_ref[...]
        out_ref[...] = (jax.nn.sigmoid(z) * g).reshape(out_ref.shape)


def prepare_custom_block(w3, b3, gamma, beta, w1, b1, W):
    """Build lane-dense weight constants ONCE per weight update (host-side numpy).
    Hoisted out of the per-forward path: kron / transpose / tile are pure overhead
    when weights are static.  Weights in PyTorch layout:
      w3: (Cout, Cin, 3, 3), b3: (Cout,), w1: (Cout, Cout, 1, 1), b1: (Cout,)."""
    w3 = np.asarray(w3, np.float32)
    Cout, Cin = w3.shape[0], w3.shape[1]
    WCin, WCout = W * Cin, W * Cout

    # Structured 3x3 conv weights: A[dy] maps a padded input row (W*Cin) to one
    # output row (W*Cout); the 3 dx taps and the width zero-padding are baked in.
    w3_t = np.transpose(w3, (2, 3, 1, 0))                         # (3,3,Cin,Cout) [dy,dx,ci,co]
    dxm = np.arange(W)[:, None] - np.arange(W)[None, :] + 1       # dx for (wx, w)
    valid = ((dxm >= 0) & (dxm < 3)).astype(np.float32)
    A = w3_t[:, np.clip(dxm, 0, 2)] * valid[None, :, :, None, None]  # (3, W, W, Cin, Cout)
    A = np.transpose(A, (0, 1, 3, 2, 4)).reshape(3, WCin, WCout)

    # 1x1 conv as a block-diagonal lane-dense matmul weight (VMEM cost ~(W*Cout)^2*4 B;
    # re-derive against v7x's 64 MiB budget / switch to per-block matmul if W*Cout > ~512).
    w1_mat = np.transpose(np.asarray(w1, np.float32)[:, :, 0, 0], (1, 0))   # (ci, co)
    w1_big = np.kron(np.eye(W, dtype=np.float32), w1_mat)                   # (WCout, WCout)

    tile_c = lambda v: np.tile(np.asarray(v, np.float32), W).reshape(1, WCout)
    return dict(
        A=jnp.asarray(A), w1_big=jnp.asarray(w1_big),
        b3=jnp.asarray(tile_c(b3)), b1=jnp.asarray(tile_c(b1)),
        gamma=jnp.asarray(tile_c(gamma)), beta=jnp.asarray(tile_c(beta)),
        Cout=Cout, Cin=Cin, W=W,
    )


def custom_block_pallas(x_nchw, params, eps=1e-5):
    """x_nchw: (N, Cin, H, W) -> (N, Cout, H, W).  `params` from prepare_custom_block."""
    N, Cin, H, W = x_nchw.shape
    Cout = params["Cout"]
    assert params["W"] == W and params["Cin"] == Cin
    WCin, WCout = W * Cin, W * Cout
    Hp = H + 2

    # Images per grid step (must divide N).  Whole batch in one step when small.
    B = N if N * H * WCout * 4 <= (2 << 20) else 1
    assert N % B == 0
    grid = (2, N // B)   # (phase, image-block); phase is the outer (slowest) axis.

    # layout glue: NCHW -> (N, H, W*Cin) lane-packed rows; pad only the 2 halo rows
    # (width halo is folded into the structured conv weights).
    x_rows = jnp.transpose(x_nchw, (0, 2, 3, 1)).astype(jnp.float32).reshape(N, H, WCin)
    xp = jnp.pad(x_rows, ((0, 0), (1, 1), (0, 0)))                 # (N, Hp, WCin)

    out_lane = pl.pallas_call(
        partial(_custom_block_kernel, eps=eps, B=B, H=H, W=W, Cout=Cout,
                inv_count=1.0 / float(N * H * W)),
        out_shape=jax.ShapeDtypeStruct((N, H, WCout), jnp.float32),
        grid_spec=pltpu.PrefetchScalarGridSpec(
            num_scalar_prefetch=0,
            grid=grid,
            in_specs=[
                # x: fetched per block in phase 0; collapsed to block 0 in phase 1
                # (no re-read of x from HBM while applying BN/GELU/1x1).
                pl.BlockSpec((B, Hp, WCin), lambda p, n: (n * (1 - p), 0, 0)),
                pl.BlockSpec((3, WCin, WCout), lambda p, n: (0, 0, 0)),  # structured conv weights
                pl.BlockSpec((1, WCout), lambda p, n: (0, 0)),           # b3 (tiled)
                pl.BlockSpec((1, WCout), lambda p, n: (0, 0)),           # gamma (tiled)
                pl.BlockSpec((1, WCout), lambda p, n: (0, 0)),           # beta (tiled)
                pl.BlockSpec((WCout, WCout), lambda p, n: (0, 0)),       # kron(I_W, w1)
                pl.BlockSpec((1, WCout), lambda p, n: (0, 0)),           # b1 (tiled)
            ],
            # Phase 0 collapses onto output block 0 (never written, never DMA'd back);
            # phase 1 writes each block exactly once -> single writeback per block.
            out_specs=pl.BlockSpec((B, H, WCout), lambda p, n: (n * p, 0, 0)),
            scratch_shapes=[
                pltpu.VMEM((N * H, WCout), jnp.float32),   # persistent conv cache
                pltpu.VMEM((8, WCout), jnp.float32),       # stats: row0 mean, row1 rstd
            ],
        ),
        compiler_params=pltpu.CompilerParams(
            # Both axes sequential: phase 1 depends on the phase-0 conv cache, and
            # phase-1 blocks n>0 read stats written at n==0.  (v7x megacore would
            # need per-core partial stats + a cross-core reduction.)
            dimension_semantics=("arbitrary", "arbitrary"),
            vmem_limit_bytes=32 << 20,
        ),
    )(xp, params["A"], params["b3"], params["gamma"], params["beta"],
      params["w1_big"], params["b1"])

    # lane-dense (N, H, W*Cout) -> NCHW
    return jnp.transpose(out_lane.reshape(N, H, W, Cout), (0, 3, 1, 2))


def custom_block_ref(x, w3, b3, gamma, beta, w1, b1, eps=1e-5):
    """Pure-JAX reference (NCHW) mirroring the PyTorch forward."""
    dn = ('NCHW', 'OIHW', 'NCHW')
    y = jax.lax.conv_general_dilated(x, w3, (1, 1), ((1, 1), (1, 1)),
                                     dimension_numbers=dn) + b3[None, :, None, None]
    mean = y.mean(axis=(0, 2, 3), keepdims=True)
    var = ((y - mean) ** 2).mean(axis=(0, 2, 3), keepdims=True)
    yh = (y - mean) * jax.lax.rsqrt(var + eps)
    yh = yh * gamma[None, :, None, None] + beta[None, :, None, None]
    g = 0.5 * yh * (1.0 + jax.lax.erf(yh / jnp.sqrt(2.0)))
    z = jax.lax.conv_general_dilated(g, w1, (1, 1), ((0, 0), (0, 0)),
                                     dimension_numbers=dn) + b1[None, :, None, None]
    return jax.nn.sigmoid(z) * g


if __name__ == "__main__":
    N, Cin, Cout, H, W = 2, 4, 8, 16, 16

    key = jax.random.PRNGKey(0)
    kx, kw3, kb3, kw1, kb1 = jax.random.split(key, 5)

    x = jax.random.normal(kx, (N, Cin, H, W), dtype=jnp.float32)

    # deterministic parameter init (PyTorch-like uniform fan-in bounds)
    bound3 = 1.0 / math.sqrt(Cin * 3 * 3)
    w3 = jax.random.uniform(kw3, (Cout, Cin, 3, 3), jnp.float32, -bound3, bound3)
    b3 = jax.random.uniform(kb3, (Cout,), jnp.float32, -bound3, bound3)
    bound1 = 1.0 / math.sqrt(Cout * 1 * 1)
    w1 = jax.random.uniform(kw1, (Cout, Cout, 1, 1), jnp.float32, -bound1, bound1)
    b1 = jax.random.uniform(kb1, (Cout,), jnp.float32, -bound1, bound1)
    gamma = jnp.ones((Cout,), jnp.float32)   # BatchNorm2d default weight
    beta = jnp.zeros((Cout,), jnp.float32)   # BatchNorm2d default bias

    # Weight-derived constants built once (hoisted out of the forward path).
    params = prepare_custom_block(w3, b3, gamma, beta, w1, b1, W)

    out = custom_block_pallas(x, params)
    out = jax.block_until_ready(out)

    ref = custom_block_ref(x, w3, b3, gamma, beta, w1, b1)
    assert out.shape == (N, Cout, H, W)
    assert jnp.allclose(out, ref, atol=1e-4, rtol=1e-4), "mismatch vs JAX reference"

    print("KERNEL_OK")
</pallas_src>

<mosaic_0001>
module attributes {stable_mosaic.version = 11 : i64} {
  func.func @_custom_block_kernel(%arg0: i32, %arg1: i32, %arg2: memref<2x18x64xf32, #tpu.memory_space<vmem>>, %arg3: memref<3x64x128xf32, #tpu.memory_space<vmem>>, %arg4: memref<1x128xf32, #tpu.memory_space<vmem>>, %arg5: memref<1x128xf32, #tpu.memory_space<vmem>>, %arg6: memref<1x128xf32, #tpu.memory_space<vmem>>, %arg7: memref<128x128xf32, #tpu.memory_space<vmem>>, %arg8: memref<1x128xf32, #tpu.memory_space<vmem>>, %arg9: memref<2x16x128xf32, #tpu.memory_space<vmem>>, %arg10: memref<32x128xf32, #tpu.memory_space<vmem>>, %arg11: memref<8x128xf32, #tpu.memory_space<vmem>>) attributes {dimension_semantics = [#tpu.dimension_semantics<arbitrary>, #tpu.dimension_semantics<arbitrary>], iteration_bounds = array<i64: 2, 1>, scalar_prefetch = 0 : i64, scratch_operands = 2 : i64, tpu.core_type = #tpu.core_type<tc>, window_params = [{transform_indices = @transform_0, window_bounds = array<i64: 2, 18, 64>}, {pipeline_mode = #tpu.pipeline_mode<synchronous>, transform_indices = @transform_1, window_bounds = array<i64: 3, 64, 128>}, {pipeline_mode = #tpu.pipeline_mode<synchronous>, transform_indices = @transform_2, window_bounds = array<i64: 1, 128>}, {pipeline_mode = #tpu.pipeline_mode<synchronous>, transform_indices = @transform_3, window_bounds = array<i64: 1, 128>}, {pipeline_mode = #tpu.pipeline_mode<synchronous>, transform_indices = @transform_4, window_bounds = array<i64: 1, 128>}, {pipeline_mode = #tpu.pipeline_mode<synchronous>, transform_indices = @transform_5, window_bounds = array<i64: 128, 128>}, {pipeline_mode = #tpu.pipeline_mode<synchronous>, transform_indices = @transform_6, window_bounds = array<i64: 1, 128>}, {transform_indices = @transform_7, window_bounds = array<i64: 2, 16, 128>}]} {
    %c32_i32 = arith.constant 32 : i32
    %0 = arith.muli %arg1, %c32_i32 : i32
    %1 = tpu.assume_multiple %0, 32 : i32
    %c0_i32 = arith.constant 0 : i32
    %2 = arith.cmpi eq, %arg0, %c0_i32 : i32
    %3 = arith.extui %2 : i1 to i32
    %c0_i32_0 = arith.constant 0 : i32
    %4 = arith.cmpi ne, %3, %c0_i32_0 : i32
    scf.if %4 {
      %c0 = arith.constant 0 : index
      %c0_5 = arith.constant 0 : index
      %c0_6 = arith.constant 0 : index
      %13 = vector.load %arg2[%c0, %c0_5, %c0_6] : memref<2x18x64xf32, #tpu.memory_space<vmem>>, vector<2x18x64xf32>
      %14 = vector.extract_strided_slice %13 {offsets = [0, 0, 0], sizes = [2, 16, 64], strides = [1, 1, 1]} : vector<2x18x64xf32> to vector<2x16x64xf32>
      %15 = vector.shape_cast %14 : vector<2x16x64xf32> to vector<32x64xf32>
      %c0_7 = arith.constant 0 : index
      %c0_8 = arith.constant 0 : index
      %c0_9 = arith.constant 0 : index
      %16 = vector.load %arg3[%c0_7, %c0_8, %c0_9] : memref<3x64x128xf32, #tpu.memory_space<vmem>>, vector<1x64x128xf32>
      %17 = vector.shape_cast %16 : vector<1x64x128xf32> to vector<64x128xf32>
      %cst = arith.constant dense<0.000000e+00> : vector<32x128xf32>
      %18 = tpu.matmul %15, %17, %cst {dimension_numbers = #tpu.dot_dimension_numbers<[1], [0], [0], [1], [0, 0, 1, 1], [], []>} : vector<32x64xf32>, vector<64x128xf32>, vector<32x128xf32> -> vector<32x128xf32>
      %19 = vector.extract_strided_slice %13 {offsets = [0, 1, 0], sizes = [2, 16, 64], strides = [1, 1, 1]} : vector<2x18x64xf32> to vector<2x16x64xf32>
      %20 = vector.shape_cast %19 : vector<2x16x64xf32> to vector<32x64xf32>
      %c1 = arith.constant 1 : index
      %c0_10 = arith.constant 0 : index
      %c0_11 = arith.constant 0 : index
      %21 = vector.load %arg3[%c1, %c0_10, %c0_11] : memref<3x64x128xf32, #tpu.memory_space<vmem>>, vector<1x64x128xf32>
      %22 = vector.shape_cast %21 : vector<1x64x128xf32> to vector<64x128xf32>
      %cst_12 = arith.constant dense<0.000000e+00> : vector<32x128xf32>
      %23 = tpu.matmul %20, %22, %cst_12 {dimension_numbers = #tpu.dot_dimension_numbers<[1], [0], [0], [1], [0, 0, 1, 1], [], []>} : vector<32x64xf32>, vector<64x128xf32>, vector<32x128xf32> -> vector<32x128xf32>
      %24 = arith.addf %18, %23 : vector<32x128xf32>
      %25 = vector.extract_strided_slice %13 {offsets = [0, 2, 0], sizes = [2, 16, 64], strides = [1, 1, 1]} : vector<2x18x64xf32> to vector<2x16x64xf32>
      %26 = vector.shape_cast %25 : vector<2x16x64xf32> to vector<32x64xf32>
      %c2 = arith.constant 2 : index
      %c0_13 = arith.constant 0 : index
      %c0_14 = arith.constant 0 : index
      %27 = vector.load %arg3[%c2, %c0_13, %c0_14] : memref<3x64x128xf32, #tpu.memory_space<vmem>>, vector<1x64x128xf32>
      %28 = vector.shape_cast %27 : vector<1x64x128xf32> to vector<64x128xf32>
      %cst_15 = arith.constant dense<0.000000e+00> : vector<32x128xf32>
      %29 = tpu.matmul %26, %28, %cst_15 {dimension_numbers = #tpu.dot_dimension_numbers<[1], [0], [0], [1], [0, 0, 1, 1], [], []>} : vector<32x64xf32>, vector<64x128xf32>, vector<32x128xf32> -> vector<32x128xf32>
      %30 = arith.addf %24, %29 : vector<32x128xf32>
      %c0_16 = arith.constant 0 : index
      %c0_17 = arith.constant 0 : index
      %31 = vector.load %arg4[%c0_16, %c0_17] : memref<1x128xf32, #tpu.memory_space<vmem>>, vector<1x128xf32>
      %32 = vector.broadcast %31 : vector<1x128xf32> to vector<32x128xf32>
      %33 = arith.addf %30, %32 : vector<32x128xf32>
      %34 = arith.index_cast %1 : i32 to index
      %c0_18 = arith.constant 0 : index
      %35 = vector.load %arg10[%34, %c0_18] : memref<32x128xf32, #tpu.memory_space<vmem>>, vector<32x128xf32>
      tpu.vector_store %arg10[%34, %c0_18], %33 {strides = array<i32>} : memref<32x128xf32, #tpu.memory_space<vmem>>, vector<32x128xf32>,
    } else {
    }
    %c1_i32 = arith.constant 1 : i32
    %5 = arith.cmpi eq, %arg0, %c1_i32 : i32
    %c0_i32_1 = arith.constant 0 : i32
    %6 = arith.cmpi eq, %arg1, %c0_i32_1 : i32
    %7 = arith.andi %5, %6 : i1
    %8 = arith.extui %7 : i1 to i32
    %c0_i32_2 = arith.constant 0 : i32
    %9 = arith.cmpi ne, %8, %c0_i32_2 : i32
    scf.if %9 {
      %c0 = arith.constant 0 : index
      %c0_5 = arith.constant 0 : index
      %13 = vector.load %arg10[%c0, %c0_5] : memref<32x128xf32, #tpu.memory_space<vmem>>, vector<32x128xf32>
      %cst = arith.constant dense<0.000000e+00> : vector<128xf32>
      %14 = vector.multi_reduction <add>, %13, %cst [0] : vector<32x128xf32> to vector<128xf32>
      %15 = vector.shape_cast %14 : vector<128xf32> to vector<1x128xf32>
      %c64_i32 = arith.constant 64 : i32
      %16 = tpu.dynamic_rotate %15 by %c64_i32 dim 1 : vector<1x128xf32>, i32 -> vector<1x128xf32>
      %17 = arith.addf %15, %16 : vector<1x128xf32>
      %c32_i32_6 = arith.constant 32 : i32
      %18 = tpu.dynamic_rotate %17 by %c32_i32_6 dim 1 : vector<1x128xf32>, i32 -> vector<1x128xf32>
      %19 = arith.addf %17, %18 : vector<1x128xf32>
      %c16_i32 = arith.constant 16 : i32
      %20 = tpu.dynamic_rotate %19 by %c16_i32 dim 1 : vector<1x128xf32>, i32 -> vector<1x128xf32>
      %21 = arith.addf %19, %20 : vector<1x128xf32>
      %c8_i32 = arith.constant 8 : i32
      %22 = tpu.dynamic_rotate %21 by %c8_i32 dim 1 : vector<1x128xf32>, i32 -> vector<1x128xf32>
      %23 = arith.addf %21, %22 : vector<1x128xf32>
      %cst_7 = arith.constant 0.001953125 : f32
      %24 = vector.broadcast %cst_7 : f32 to vector<1x128xf32>
      %25 = arith.mulf %23, %24 : vector<1x128xf32>
      %26 = vector.broadcast %25 : vector<1x128xf32> to vector<32x128xf32>
      %27 = arith.subf %13, %26 : vector<32x128xf32>
      %28 = arith.mulf %27, %27 : vector<32x128xf32>
      %cst_8 = arith.constant dense<0.000000e+00> : vector<128xf32>
      %29 = vector.multi_reduction <add>, %28, %cst_8 [0] : vector<32x128xf32> to vector<128xf32>
      %30 = vector.shape_cast %29 : vector<128xf32> to vector<1x128xf32>
      %c64_i32_9 = arith.constant 64 : i32
      %31 = tpu.dynamic_rotate %30 by %c64_i32_9 dim 1 : vector<1x128xf32>, i32 -> vector<1x128xf32>
      %32 = arith.addf %30, %31 : vector<1x128xf32>
      %c32_i32_10 = arith.constant 32 : i32
      %33 = tpu.dynamic_rotate %32 by %c32_i32_10 dim 1 : vector<1x128xf32>, i32 -> vector<1x128xf32>
      %34 = arith.addf %32, %33 : vector<1x128xf32>
      %c16_i32_11 = arith.constant 16 : i32
      %35 = tpu.dynamic_rotate %34 by %c16_i32_11 dim 1 : vector<1x128xf32>, i32 -> vector<1x128xf32>
      %36 = arith.addf %34, %35 : vector<1x128xf32>
      %c8_i32_12 = arith.constant 8 : i32
      %37 = tpu.dynamic_rotate %36 by %c8_i32_12 dim 1 : vector<1x128xf32>, i32 -> vector<1x128xf32>
      %38 = arith.addf %36, %37 : vector<1x128xf32>
      %cst_13 = arith.constant 0.001953125 : f32
      %39 = vector.broadcast %cst_13 : f32 to vector<1x128xf32>
      %40 = arith.mulf %38, %39 : vector<1x128xf32>
      %c0_14 = arith.constant 0 : index
      %c0_15 = arith.constant 0 : index
      %41 = vector.load %arg11[%c0_14, %c0_15] : memref<8x128xf32, #tpu.memory_space<vmem>>, vector<1x128xf32>
      tpu.vector_store %arg11[%c0_14, %c0_15], %25 {strides = array<i32>} : memref<8x128xf32, #tpu.memory_space<vmem>>, vector<1x128xf32>,
      %cst_16 = arith.constant 9.99999974E-6 : f32
      %42 = vector.broadcast %cst_16 : f32 to vector<1x128xf32>
      %43 = arith.addf %40, %42 : vector<1x128xf32>
      %44 = math.rsqrt %43 : vector<1x128xf32>
      %c1 = arith.constant 1 : index
      %c0_17 = arith.constant 0 : index
      %45 = vector.load %arg11[%c1, %c0_17] : memref<8x128xf32, #tpu.memory_space<vmem>>, vector<1x128xf32>
      tpu.vector_store %arg11[%c1, %c0_17], %44 {strides = array<i32>} : memref<8x128xf32, #tpu.memory_space<vmem>>, vector<1x128xf32>,
    } else {
    }
    %c1_i32_3 = arith.constant 1 : i32
    %10 = arith.cmpi eq, %arg0, %c1_i32_3 : i32
    %11 = arith.extui %10 : i1 to i32
    %c0_i32_4 = arith.constant 0 : i32
    %12 = arith.cmpi ne, %11, %c0_i32_4 : i32
    scf.if %12 {
      %13 = arith.index_cast %1 : i32 to index
      %c0 = arith.constant 0 : index
      %14 = vector.load %arg10[%13, %c0] : memref<32x128xf32, #tpu.memory_space<vmem>>, vector<32x128xf32>
      %c0_5 = arith.constant 0 : index
      %c0_6 = arith.constant 0 : index
      %15 = vector.load %arg11[%c0_5, %c0_6] : memref<8x128xf32, #tpu.memory_space<vmem>>, vector<1x128xf32>
      %c1 = arith.constant 1 : index
      %c0_7 = arith.constant 0 : index
      %16 = vector.load %arg11[%c1, %c0_7] : memref<8x128xf32, #tpu.memory_space<vmem>>, vector<1x128xf32>
      %17 = vector.broadcast %15 : vector<1x128xf32> to vector<32x128xf32>
      %18 = arith.subf %14, %17 : vector<32x128xf32>
      %19 = vector.broadcast %16 : vector<1x128xf32> to vector<32x128xf32>
      %20 = arith.mulf %18, %19 : vector<32x128xf32>
      %c0_8 = arith.constant 0 : index
      %c0_9 = arith.constant 0 : index
      %21 = vector.load %arg5[%c0_8, %c0_9] : memref<1x128xf32, #tpu.memory_space<vmem>>, vector<1x128xf32>
      %22 = vector.broadcast %21 : vector<1x128xf32> to vector<32x128xf32>
      %23 = arith.mulf %20, %22 : vector<32x128xf32>
      %c0_10 = arith.constant 0 : index
      %c0_11 = arith.constant 0 : index
      %24 = vector.load %arg6[%c0_10, %c0_11] : memref<1x128xf32, #tpu.memory_space<vmem>>, vector<1x128xf32>
      %25 = vector.broadcast %24 : vector<1x128xf32> to vector<32x128xf32>
      %26 = arith.addf %23, %25 : vector<32x128xf32>
      %cst = arith.constant 5.000000e-01 : f32
      %27 = vector.broadcast %cst : f32 to vector<32x128xf32>
      %28 = arith.mulf %27, %26 : vector<32x128xf32>
      %cst_12 = arith.constant 0.707106769 : f32
      %29 = vector.broadcast %cst_12 : f32 to vector<32x128xf32>
      %30 = arith.mulf %26, %29 : vector<32x128xf32>
      %31 = math.erf %30 : vector<32x128xf32>
      %cst_13 = arith.constant 1.000000e+00 : f32
      %32 = vector.broadcast %cst_13 : f32 to vector<32x128xf32>
      %33 = arith.addf %32, %31 : vector<32x128xf32>
      %34 = arith.mulf %28, %33 : vector<32x128xf32>
      %c0_14 = arith.constant 0 : index
      %c0_15 = arith.constant 0 : index
      %35 = vector.load %arg7[%c0_14, %c0_15] : memref<128x128xf32, #tpu.memory_space<vmem>>, vector<128x128xf32>
      %cst_16 = arith.constant dense<0.000000e+00> : vector<32x128xf32>
      %36 = tpu.matmul %34, %35, %cst_16 {dimension_numbers = #tpu.dot_dimension_numbers<[1], [0], [0], [1], [0, 0, 1, 1], [], []>} : vector<32x128xf32>, vector<128x128xf32>, vector<32x128xf32> -> vector<32x128xf32>
      %c0_17 = arith.constant 0 : index
      %c0_18 = arith.constant 0 : index
      %37 = vector.load %arg8[%c0_17, %c0_18] : memref<1x128xf32, #tpu.memory_space<vmem>>, vector<1x128xf32>
      %38 = vector.broadcast %37 : vector<1x128xf32> to vector<32x128xf32>
      %39 = arith.addf %36, %38 : vector<32x128xf32>
      %40 = arith.negf %39 : vector<32x128xf32>
      %41 = math.exp %40 : vector<32x128xf32>
      %cst_19 = arith.constant 1.000000e+00 : f32
      %42 = vector.broadcast %cst_19 : f32 to vector<32x128xf32>
      %43 = arith.addf %42, %41 : vector<32x128xf32>
      %44 = arith.divf %42, %43 : vector<32x128xf32>
      %45 = arith.mulf %44, %34 : vector<32x128xf32>
      %46 = vector.shape_cast %45 : vector<32x128xf32> to vector<2x16x128xf32>
      %c0_20 = arith.constant 0 : index
      %c0_21 = arith.constant 0 : index
      %c0_22 = arith.constant 0 : index
      %47 = vector.load %arg9[%c0_20, %c0_21, %c0_22] : memref<2x16x128xf32, #tpu.memory_space<vmem>>, vector<2x16x128xf32>
      tpu.vector_store %arg9[%c0_20, %c0_21, %c0_22], %46 {strides = array<i32>} : memref<2x16x128xf32, #tpu.memory_space<vmem>>, vector<2x16x128xf32>,
    } else {
    }
    return
  }
  func.func @transform_0(%arg0: i32, %arg1: i32) -> (i32, i32, i32) {
    %c1_i32 = arith.constant 1 : i32
    %0 = arith.subi %c1_i32, %arg0 : i32
    %1 = arith.muli %arg1, %0 : i32
    %c0_i32 = arith.constant 0 : i32
    %c0_i32_0 = arith.constant 0 : i32
    %c0_i32_1 = arith.constant 0 : i32
    return %1, %c0_i32, %c0_i32_0 : i32, i32, i32
  }
  func.func @transform_1(%arg0: i32, %arg1: i32) -> (i32, i32, i32) {
    %c0_i32 = arith.constant 0 : i32
    %c0_i32_0 = arith.constant 0 : i32
    %c0_i32_1 = arith.constant 0 : i32
    %c0_i32_2 = arith.constant 0 : i32
    return %c0_i32, %c0_i32_0, %c0_i32_1 : i32, i32, i32
  }
  func.func @transform_2(%arg0: i32, %arg1: i32) -> (i32, i32) {
    %c0_i32 = arith.constant 0 : i32
    %c0_i32_0 = arith.constant 0 : i32
    %c0_i32_1 = arith.constant 0 : i32
    return %c0_i32, %c0_i32_0 : i32, i32
  }
  func.func @transform_3(%arg0: i32, %arg1: i32) -> (i32, i32) {
    %c0_i32 = arith.constant 0 : i32
    %c0_i32_0 = arith.constant 0 : i32
    %c0_i32_1 = arith.constant 0 : i32
    return %c0_i32, %c0_i32_0 : i32, i32
  }
  func.func @transform_4(%arg0: i32, %arg1: i32) -> (i32, i32) {
    %c0_i32 = arith.constant 0 : i32
    %c0_i32_0 = arith.constant 0 : i32
    %c0_i32_1 = arith.constant 0 : i32
    return %c0_i32, %c0_i32_0 : i32, i32
  }
  func.func @transform_5(%arg0: i32, %arg1: i32) -> (i32, i32) {
    %c0_i32 = arith.constant 0 : i32
    %c0_i32_0 = arith.constant 0 : i32
    %c0_i32_1 = arith.constant 0 : i32
    return %c0_i32, %c0_i32_0 : i32, i32
  }
  func.func @transform_6(%arg0: i32, %arg1: i32) -> (i32, i32) {
    %c0_i32 = arith.constant 0 : i32
    %c0_i32_0 = arith.constant 0 : i32
    %c0_i32_1 = arith.constant 0 : i32
    return %c0_i32, %c0_i32_0 : i32, i32
  }
  func.func @transform_7(%arg0: i32, %arg1: i32) -> (i32, i32, i32) {
    %0 = arith.muli %arg1, %arg0 : i32
    %c0_i32 = arith.constant 0 : i32
    %c0_i32_0 = arith.constant 0 : i32
    %c0_i32_1 = arith.constant 0 : i32
    return %0, %c0_i32, %c0_i32_0 : i32, i32, i32
  }
}

</mosaic_0001>

<llo_original>
// kernel: tpu_custom_call.1
$region0: #{tpu_custom_call.1}
  #allocation0 [shape = 'u32[]', space=smem, size = 0x4, offset = 0x4, fixed_abs, tag = 'smem constant byte address 0x4 - core index']
  #allocation1 [shape = 'u32[144,128]{1,0:T(1,128)}', space=vmem, size = 0x12000, scoped, tag = 'internal scratch']
  #allocation2 [shape = 'f32[32,128]{1,0:T(8,128)}', space=vmem, size = 0x4000, scoped, tag = 'scratch operand']
  #allocation3 [shape = 'f32[8,128]{1,0:T(8,128)}', space=vmem, size = 0x1000, scoped, tag = 'scratch operand']
  %s0 = inlined_call_operand.vmem [shape: f32[2,18,64], index: 0, kind: input, shape index: {}]
  %s1 = inlined_call_operand.hbm [shape: f32[3,64,128], index: 1, kind: input, shape index: {}]
  %s2 = inlined_call_operand.vmem [shape: f32[1,128], index: 2, kind: input, shape index: {}]
  %s3 = inlined_call_operand.vmem [shape: f32[1,128], index: 3, kind: input, shape index: {}]
  %s4 = inlined_call_operand.vmem [shape: f32[1,128], index: 4, kind: input, shape index: {}]
  %s5 = inlined_call_operand.hbm [shape: f32[128,128], index: 5, kind: input, shape index: {}]
  %s6 = inlined_call_operand.vmem [shape: f32[1,128], index: 6, kind: input, shape index: {}]
  %s7 = inlined_call_operand.hbm [shape: f32[2,16,128], index: 7, kind: output, shape index: {}]
  %s8 = sld [smem:[#allocation0]]
  $region81: #{tpu_custom_call.1} parent=0
    _
  %s10 = ssub.s32 1, %s8
  %s11 = scalar_select 0, %s10, %s8
  $region1: #{tpu_custom_call.1} parent=0
    #allocation4 [shape = 'u8[98304]{0}', space=vmem, size = 0x18000, scoped, tag = 'input window, operand 1, single buffered']
    #allocation5 [shape = 's32[2]{0}', space=sflag, size = 0x8, scoped, tag = 'scoped memory for tpu_custom_call.1']
    #allocation6 [shape = 's32[2]{0}', space=sflag, size = 0x8, scoped, tag = 'scoped memory for tpu_custom_call.1']
    #allocation7 [shape = 'u8[65536]{0}', space=vmem, size = 0x10000, scoped, tag = 'input window, operand 5, single buffered']
    #allocation8 [shape = 's32[1]{0}', space=sflag, size = 0x4, scoped, tag = 'scoped memory for tpu_custom_call.1']
    #allocation9 [shape = 'u8[32768]{0}', space=vmem, size = 0x8000, scoped, tag = 'output window, operand 0']
    %12 = vsyncpa [#allocation5], 0
    %13 = vsyncpa [#allocation8], 0
    %14 = vsyncpa [#allocation6], 0
    %s15 = scalar_lea.sflag [#allocation6], 1
    %16 = vsyncpa %s15, 0
    loop: start=0, step=1, limit=4
    $region2: #{tpu_custom_call.1} parent=1 // loop_pre_header
      _
    $region3: #{tpu_custom_call.1} parent=1 // loop_header
      %s18 = sphi 0, %s22
      %p19 = scmp.ge.s32.totalorder %s18, 4
      %s25 = sphi 0, %s37
      %s26 = sphi 0, %s33
      %s27 = sphi 0, %s25
      %s28 = sphi 0, %s26
      %s29 = sphi 0, %s27
      %s30 = sphi 0, %s28
      %s44 = sphi 0, %s46
      %s47 = sphi 0, %s44
      %s48 = sphi 0, %s47
      %s64 = sphi 0, %s48
      %s68 = sphi 0, %s68
      %s70 = sphi 0, %s68
      %s71 = sphi 0, %s70
      %s85 = sphi 0, %s71
      %s89 = sphi 0, %s89
      %s91 = sphi 0, %s89
      %s92 = sphi 0, %s91
      %s106 = sphi 0, %s92
      %s110 = sphi 0, %s110
      %s112 = sphi 0, %s110
      %s113 = sphi 0, %s112
      %s127 = sphi 0, %s113
      %s131 = sphi 0, %s131
      %s133 = sphi 0, %s131
      %s134 = sphi 0, %s133
      %s148 = sphi 0, %s134
      %s152 = sphi 0, %s152
      %s154 = sphi 0, %s152
      %s155 = sphi 0, %s154
      %s169 = sphi 0, %s155
      %s173 = sphi 0, %s173
      %s175 = sphi 0, %s173
      %s176 = sphi 0, %s175
      %s190 = sphi 0, %s176
      %s198 = sphi 0, %s200
      %s201 = sphi 0, %s198
      %s202 = sphi 0, %s201
      %s218 = sphi 0, %s202
    $region4: #{tpu_custom_call.1} parent=1 // loop_header_branch
      %21 = sbr.rel (%p19) target = $region8
    $region5: #{tpu_custom_call.1} parent=1 // loop_body
      %s23 = ssub.s32 %s18, 1
      %s24 = ssub.s32 %s18, 2
      %s31 = sadd.s32 1, %s26
      %p32 = scmp.ge.s32.totalorder %s31, 1
      %s33 = scalar_select %p32, 0, %s31
      %s34 = sadd.s32 1, %s25
      %s35 = scalar_select %p32, %s34, %s25
      %p36 = scmp.ge.s32.totalorder %s35, 2
      %s37 = scalar_select %p36, 0, %s35
      %s38 = ssub.s32 1, %s25
      %s39 = smul.u32 %s26, %s38
      %s40 = ssub.s32 1, %s37
      %s41 = smul.u32 %s33, %s40
      %s42 = ssub.s32 %s39, %s41
      %p43 = scmp.eq.s32.totalorder %s42, 0
      %s45 = sadd.s32 %s44, 1
      %s46 = scalar_select %p43, %s44, %s45
      %p49 = pneg %p43
      %p50 = scmp.eq.s32.totalorder %s18, 1
      %p51 = por %p49, %p50
      %p52 = scmp.ne.s32.totalorder %s44, %s47
      %p53 = scmp.eq.s32.totalorder %s18, 0
      %p54 = por %p52, %p53
      %p55 = scmp.ne.s32.totalorder %s44, %s47
      %p56 = scmp.eq.s32.totalorder %s23, 1
      %p57 = por %p55, %p56
      %p58 = scmp.ne.s32.totalorder %s47, %s48
      %p59 = scmp.eq.s32.totalorder %s23, 0
      %p60 = por %p58, %p59
      %p61 = scmp.ne.s32.totalorder %s47, %s48
      %p62 = scmp.eq.s32.totalorder %s24, 1
      %p63 = por %p61, %p62
      %p65 = scmp.ne.s32.totalorder %s48, %s64
      %p66 = scmp.eq.s32.totalorder %s24, 0
      %p67 = por %p65, %p66
      %s69 = sadd.s32 %s68, 1
      %p72 = scmp.eq.s32.totalorder %s18, 1
      %p73 = scmp.ne.s32.totalorder %s68, %s70
      %p74 = scmp.eq.s32.totalorder %s18, 0
      %p75 = por %p73, %p74
      %p76 = scmp.ne.s32.totalorder %s68, %s70
      %p77 = scmp.eq.s32.totalorder %s23, 1
      %p78 = por %p76, %p77
      %p79 = scmp.ne.s32.totalorder %s70, %s71
      %p80 = scmp.eq.s32.totalorder %s23, 0
      %p81 = por %p79, %p80
      %p82 = scmp.ne.s32.totalorder %s70, %s71
      %p83 = scmp.eq.s32.totalorder %s24, 1
      %p84 = por %p82, %p83
      %p86 = scmp.ne.s32.totalorder %s71, %s85
      %p87 = scmp.eq.s32.totalorder %s24, 0
      %p88 = por %p86, %p87
      %s90 = sadd.s32 %s89, 1
      %p93 = scmp.eq.s32.totalorder %s18, 1
      %p94 = scmp.ne.s32.totalorder %s89, %s91
      %p95 = scmp.eq.s32.totalorder %s18, 0
      %p96 = por %p94, %p95
      %p97 = scmp.ne.s32.totalorder %s89, %s91
      %p98 = scmp.eq.s32.totalorder %s23, 1
      %p99 = por %p97, %p98
      %p100 = scmp.ne.s32.totalorder %s91, %s92
      %p101 = scmp.eq.s32.totalorder %s23, 0
      %p102 = por %p100, %p101
      %p103 = scmp.ne.s32.totalorder %s91, %s92
      %p104 = scmp.eq.s32.totalorder %s24, 1
      %p105 = por %p103, %p104
      %p107 = scmp.ne.s32.totalorder %s92, %s106
      %p108 = scmp.eq.s32.totalorder %s24, 0
      %p109 = por %p107, %p108
      %s111 = sadd.s32 %s110, 1
      %p114 = scmp.eq.s32.totalorder %s18, 1
      %p115 = scmp.ne.s32.totalorder %s110, %s112
      %p116 = scmp.eq.s32.totalorder %s18, 0
      %p117 = por %p115, %p116
      %p118 = scmp.ne.s32.totalorder %s110, %s112
      %p119 = scmp.eq.s32.totalorder %s23, 1
      %p120 = por %p118, %p119
      %p121 = scmp.ne.s32.totalorder %s112, %s113
      %p122 = scmp.eq.s32.totalorder %s23, 0
      %p123 = por %p121, %p122
      %p124 = scmp.ne.s32.totalorder %s112, %s113
      %p125 = scmp.eq.s32.totalorder %s24, 1
      %p126 = por %p124, %p125
      %p128 = scmp.ne.s32.totalorder %s113, %s127
      %p129 = scmp.eq.s32.totalorder %s24, 0
      %p130 = por %p128, %p129
      %s132 = sadd.s32 %s131, 1
      %p135 = scmp.eq.s32.totalorder %s18, 1
      %p136 = scmp.ne.s32.totalorder %s131, %s133
      %p137 = scmp.eq.s32.totalorder %s18, 0
      %p138 = por %p136, %p137
      %p139 = scmp.ne.s32.totalorder %s131, %s133
      %p140 = scmp.eq.s32.totalorder %s23, 1
      %p141 = por %p139, %p140
      %p142 = scmp.ne.s32.totalorder %s133, %s134
      %p143 = scmp.eq.s32.totalorder %s23, 0
      %p144 = por %p142, %p143
      %p145 = scmp.ne.s32.totalorder %s133, %s134
      %p146 = scmp.eq.s32.totalorder %s24, 1
      %p147 = por %p145, %p146
      %p149 = scmp.ne.s32.totalorder %s134, %s148
      %p150 = scmp.eq.s32.totalorder %s24, 0
      %p151 = por %p149, %p150
      %s153 = sadd.s32 %s152, 1
      %p156 = scmp.eq.s32.totalorder %s18, 1
      %p157 = scmp.ne.s32.totalorder %s152, %s154
      %p158 = scmp.eq.s32.totalorder %s18, 0
      %p159 = por %p157, %p158
      %p160 = scmp.ne.s32.totalorder %s152, %s154
      %p161 = scmp.eq.s32.totalorder %s23, 1
      %p162 = por %p160, %p161
      %p163 = scmp.ne.s32.totalorder %s154, %s155
      %p164 = scmp.eq.s32.totalorder %s23, 0
      %p165 = por %p163, %p164
      %p166 = scmp.ne.s32.totalorder %s154, %s155
      %p167 = scmp.eq.s32.totalorder %s24, 1
      %p168 = por %p166, %p167
      %p170 = scmp.ne.s32.totalorder %s155, %s169
      %p171 = scmp.eq.s32.totalorder %s24, 0
      %p172 = por %p170, %p171
      %s174 = sadd.s32 %s173, 1
      %p177 = scmp.eq.s32.totalorder %s18, 1
      %p178 = scmp.ne.s32.totalorder %s173, %s175
      %p179 = scmp.eq.s32.totalorder %s18, 0
      %p180 = por %p178, %p179
      %p181 = scmp.ne.s32.totalorder %s173, %s175
      %p182 = scmp.eq.s32.totalorder %s23, 1
      %p183 = por %p181, %p182
      %p184 = scmp.ne.s32.totalorder %s175, %s176
      %p185 = scmp.eq.s32.totalorder %s23, 0
      %p186 = por %p184, %p185
      %p187 = scmp.ne.s32.totalorder %s175, %s176
      %p188 = scmp.eq.s32.totalorder %s24, 1
      %p189 = por %p187, %p188
      %p191 = scmp.ne.s32.totalorder %s176, %s190
      %p192 = scmp.eq.s32.totalorder %s24, 0
      %p193 = por %p191, %p192
      %s194 = smul.u32 %s26, %s25
      %s195 = smul.u32 %s33, %s37
      %s196 = ssub.s32 %s194, %s195
      %p197 = scmp.eq.s32.totalorder %s196, 0
      %s199 = sadd.s32 %s198, 1
      %s200 = scalar_select %p197, %s198, %s199
      %p203 = pneg %p197
      %p204 = scmp.eq.s32.totalorder %s18, 1
      %p205 = por %p203, %p204
      %p206 = scmp.ne.s32.totalorder %s198, %s201
      %p207 = scmp.eq.s32.totalorder %s18, 0
      %p208 = por %p206, %p207
      %p209 = scmp.ne.s32.totalorder %s198, %s201
      %p210 = scmp.eq.s32.totalorder %s23, 1
      %p211 = por %p209, %p210
      %p212 = scmp.ne.s32.totalorder %s201, %s202
      %p213 = scmp.eq.s32.totalorder %s23, 0
      %p214 = por %p212, %p213
      %p215 = scmp.ne.s32.totalorder %s201, %s202
      %p216 = scmp.eq.s32.totalorder %s24, 1
      %p217 = por %p215, %p216
      %p219 = scmp.ne.s32.totalorder %s202, %s218
      %p220 = scmp.eq.s32.totalorder %s24, 0
      %p221 = por %p219, %p220
      %p222 = scmp.le.s32.totalorder 1, %s18
      %p223 = scmp.lt.s32.totalorder %s18, 3
      %p224 = pnand %p222, %p223
      %p225 = pneg %p224
      // Predicated region
      $region9: #{tpu_custom_call.1} parent=5 // pred_check
        _
      $region10: #{tpu_custom_call.1} parent=5 // pred_check_branch
        %227 = sbr.rel (%p224) target = $region12
      $region11: #{tpu_custom_call.1} parent=5 // pred_region
        %s228 = ssub.s32 %s18, 1
        // Predicated region
        $region13: #{tpu_custom_call.1} parent=11 // pred_check
          %p229 = pneg %p81
        $region14: #{tpu_custom_call.1} parent=11 // pred_check_branch
          %231 = sbr.rel (%p229) target = $region16
        $region15: #{tpu_custom_call.1} parent=11 // pred_region
          %s233 = ssub.s32 3072, 3072
          %234 = vsyncadd [#allocation5], %s233
          %s235 = sshll.u32 [#allocation4], 4
          %s236 = int_to_ptr.vmem [resolvable:$true] %s235
          %241 = dma.hbm_to_vmem [thread:$0]  %s1, 3072, %s236, [#allocation5], 128, 128, 8
        $region16: #{tpu_custom_call.1} parent=11 // pred_fallthru
          _
        // Predicated region
        $region17: #{tpu_custom_call.1} parent=11 // pred_check
          %p242 = pneg %p102
        $region18: #{tpu_custom_call.1} parent=11 // pred_check_branch
          %244 = sbr.rel (%p242) target = $region20
        $region19: #{tpu_custom_call.1} parent=11 // pred_region
          _
        $region20: #{tpu_custom_call.1} parent=11 // pred_fallthru
          _
        // Predicated region
        $region21: #{tpu_custom_call.1} parent=11 // pred_check
          %p245 = pneg %p123
        $region22: #{tpu_custom_call.1} parent=11 // pred_check_branch
          %247 = sbr.rel (%p245) target = $region24
        $region23: #{tpu_custom_call.1} parent=11 // pred_region
          _
        $region24: #{tpu_custom_call.1} parent=11 // pred_fallthru
          _
        // Predicated region
        $region25: #{tpu_custom_call.1} parent=11 // pred_check
          %p248 = pneg %p144
        $region26: #{tpu_custom_call.1} parent=11 // pred_check_branch
          %250 = sbr.rel (%p248) target = $region28
        $region27: #{tpu_custom_call.1} parent=11 // pred_region
          _
        $region28: #{tpu_custom_call.1} parent=11 // pred_fallthru
          _
        // Predicated region
        $region29: #{tpu_custom_call.1} parent=11 // pred_check
          %p251 = pneg %p165
        $region30: #{tpu_custom_call.1} parent=11 // pred_check_branch
          %253 = sbr.rel (%p251) target = $region32
        $region31: #{tpu_custom_call.1} parent=11 // pred_region
          %s255 = ssub.s32 2048, 2048
          %256 = vsyncadd [#allocation8], %s255
          %s257 = sshll.u32 [#allocation7], 4
          %s258 = int_to_ptr.vmem [resolvable:$true] %s257
          %263 = dma.hbm_to_vmem [thread:$0]  %s5, 2048, %s258, [#allocation8], 128, 128, 8
        $region32: #{tpu_custom_call.1} parent=11 // pred_fallthru
          _
        // Predicated region
        $region33: #{tpu_custom_call.1} parent=11 // pred_check
          %p264 = pneg %p186
        $region34: #{tpu_custom_call.1} parent=11 // pred_check_branch
          %266 = sbr.rel (%p264) target = $region36
        $region35: #{tpu_custom_call.1} parent=11 // pred_region
          _
        $region36: #{tpu_custom_call.1} parent=11 // pred_fallthru
          _
      $region12: #{tpu_custom_call.1} parent=5 // pred_fallthru
        _
      %p267 = scmp.lt.s32.totalorder %s18, 2
      // Predicated region
      $region37: #{tpu_custom_call.1} parent=5 // pred_check
        %p268 = pneg %p267
      $region38: #{tpu_custom_call.1} parent=5 // pred_check_branch
        %270 = sbr.rel (%p268) target = $region40
      $region39: #{tpu_custom_call.1} parent=5 // pred_region
        // Predicated region
        $region41: #{tpu_custom_call.1} parent=39 // pred_check
          %p271 = pneg %p54
        $region42: #{tpu_custom_call.1} parent=39 // pred_check_branch
          %273 = sbr.rel (%p271) target = $region44
        $region43: #{tpu_custom_call.1} parent=39 // pred_region
          %s274 = ssub.s32 1, %s25
          %s275 = smul.u32 %s26, %s274
          %s276 = smul.u32 2, %s275
          %p277 = scmp.lt.s32.totalorder %s276, 1
          %s278 = scalar_select %p277, %s276, 1
          %s279 = smul.addr %s278, 3
          %s280 = smul.addr %s279, 8
          %s281 = scalar_lea.vmem %s0, %s280
          %s282 = ssub.s32 1, %s25
          %s283 = smul.u32 %s26, %s282
          %s284 = smul.u32 2, %s283
        $region44: #{tpu_custom_call.1} parent=39 // pred_fallthru
          _
      $region40: #{tpu_custom_call.1} parent=5 // pred_fallthru
        _
      %p285 = scmp.le.s32.totalorder 1, %s18
      %p286 = scmp.lt.s32.totalorder %s18, 3
      %p287 = pnand %p285, %p286
      %p288 = pneg %p287
      // Predicated region
      $region45: #{tpu_custom_call.1} parent=5 // pred_check
        _
      $region46: #{tpu_custom_call.1} parent=5 // pred_check_branch
        %290 = sbr.rel (%p287) target = $region48
      $region47: #{tpu_custom_call.1} parent=5 // pred_region
        %s291 = ssub.s32 %s18, 1
        // Predicated region
        $region49: #{tpu_custom_call.1} parent=47 // pred_check
          %p292 = pneg %p81
        $region50: #{tpu_custom_call.1} parent=47 // pred_check_branch
          %294 = sbr.rel (%p292) target = $region52
        $region51: #{tpu_custom_call.1} parent=47 // pred_region
          %295 = dma.done [#allocation5], 3072
        $region52: #{tpu_custom_call.1} parent=47 // pred_fallthru
          _
        // Predicated region
        $region53: #{tpu_custom_call.1} parent=47 // pred_check
          %p296 = pneg %p165
        $region54: #{tpu_custom_call.1} parent=47 // pred_check_branch
          %298 = sbr.rel (%p296) target = $region56
        $region55: #{tpu_custom_call.1} parent=47 // pred_region
          %299 = dma.done [#allocation8], 2048
        $region56: #{tpu_custom_call.1} parent=47 // pred_fallthru
          _
        %s300 = ssub.s32 1, %s27
        %s301 = smul.u32 %s28, %s300
        %s302 = smul.u32 2, %s301
        %p303 = scmp.lt.s32.totalorder %s302, 1
        %s304 = scalar_select %p303, %s302, 1
        %s305 = smul.addr %s304, 3
        %s306 = smul.addr %s305, 8
        %s307 = scalar_lea.vmem %s0, %s306
        %p308 = pneg %p60
        %p309 = pneg %p57
        %p310 = pneg %p81
        %p311 = pneg %p78
        %p312 = pneg %p102
        %p313 = pneg %p99
        %p314 = pneg %p123
        %p315 = pneg %p120
        %p316 = pneg %p144
        %p317 = pneg %p141
        %p318 = pneg %p165
        %p319 = pneg %p162
        %p320 = pneg %p186
        %p321 = pneg %p183
        %p322 = pneg %p214
        %p323 = pneg %p211
        %s324 = sand.u32 %s201, 1
        %s325 = scalar_lea.sflag [#allocation6], %s324
        %s326 = sand.u32 %s201, 1
        %s327 = smul.addr %s326, 32
        %s328 = scalar_lea.vmem [#allocation9], %s327
        %s329 = ssub.s32 1, %s27
        %s330 = smul.u32 %s28, %s329
        %s331 = smul.u32 2, %s330
        %p332 = scmp.lt.s32.totalorder %s331, 1
        %s333 = scalar_select %p332, %s331, 1
        %s334 = smul.addr %s333, 3
        %s335 = smul.addr %s334, 8
        %s336 = scalar_lea.vmem %s0, %s335
        %s337 = ssub.s32 1, %s27
        %s338 = smul.u32 %s28, %s337
        %s339 = smul.u32 2, %s338
        %s340 = smul.u32 %s28, %s27
        %s341 = smul.u32 2, %s340
        %s342 = smul.u32 %s28, 32
        %p343 = scmp.eq.s32.totalorder %s27, 0
        // Predicated region
        $region57: #{tpu_custom_call.1} parent=47 // pred_check
          %p344 = pneg %p343
        $region58: #{tpu_custom_call.1} parent=47 // pred_check_branch
          %346 = sbr.rel (%p344) target = $region60
        $region59: #{tpu_custom_call.1} parent=47 // pred_region
          %v347 = vld [vmem:[%s336] sm:$0xff]
          %v348 = vld [vmem:[%s336 + $0x8] sm:$0xff]
          %v349 = vld [vmem:[%s336 + $0x10] sm:$0x3]
          %v350 = vld [vmem:[%s336 + $0x18] sm:$0xff]
          %v351 = vld [vmem:[%s336 + $0x20] sm:$0xff]
          %v352 = vld [vmem:[%s336 + $0x28] sm:$0x3]
          %v353 = vld [vmem:[#allocation4] sm:$0xff]
          %v354 = vld [vmem:[#allocation4 + $0x8] sm:$0xff]
          %v355 = vld [vmem:[#allocation4 + $0x10] sm:$0xff]
          %v356 = vld [vmem:[#allocation4 + $0x18] sm:$0xff]
          %v357 = vld [vmem:[#allocation4 + $0x20] sm:$0xff]
          %v358 = vld [vmem:[#allocation4 + $0x28] sm:$0xff]
          %v359 = vld [vmem:[#allocation4 + $0x30] sm:$0xff]
          %v360 = vld [vmem:[#allocation4 + $0x38] sm:$0xff]
          %vm367 = vcmask 1046528
          %v368 = vrot.slane %v347, 1
          %v369 = vrot.slane %v348, 1
          %v370 = vsel %vm367, %v368, %v369
          %v371 = vrot.slane %v349, 1
          %v372 = vsel %vm367, %v369, %v371
          %v373 = vrot.slane %v350, 1
          %v374 = vrot.slane %v351, 1
          %v375 = vsel %vm367, %v373, %v374
          %v376 = vrot.slane %v352, 1
          %v377 = vsel %vm367, %v374, %v376
          %s378 = scalar_lea.vmem [#allocation4], 64
          %v379 = vld [vmem:[%s378] sm:$0xff]
          %v380 = vld [vmem:[%s378 + $0x8] sm:$0xff]
          %v381 = vld [vmem:[%s378 + $0x10] sm:$0xff]
          %v382 = vld [vmem:[%s378 + $0x18] sm:$0xff]
          %v383 = vld [vmem:[%s378 + $0x20] sm:$0xff]
          %v384 = vld [vmem:[%s378 + $0x28] sm:$0xff]
          %v385 = vld [vmem:[%s378 + $0x30] sm:$0xff]
          %v386 = vld [vmem:[%s378 + $0x38] sm:$0xff]
          %vm387 = vcmask 523264
          %v388 = vsel %vm387, %v370, 0
          %v390 = vsel %vm387, %v372, 0
          %v392 = vsel %vm387, %v375, 0
          %v394 = vsel %vm387, %v377, 0
          %396 = vmatprep.subr.mxu0 0.0
          %397 = vmatpush1.msra.mxu0 %v379
          %398 = vmatprep.subr.mxu0 0.0
          %399 = vmatpush1.msra.mxu0 %v380
          %400 = vmatprep.subr.mxu0 0.0
          %401 = vmatpush1.msra.mxu0 %v381
          %402 = vmatprep.subr.mxu0 0.0
          %403 = vmatpush1.msra.mxu0 %v382
          %404 = vmatprep.subr.mxu0 0.0
          %405 = vmatpush1.msra.mxu0 %v383
          %406 = vmatprep.subr.mxu0 0.0
          %407 = vmatpush1.msra.mxu0 %v384
          %408 = vmatprep.subr.mxu0 0.0
          %409 = vmatpush1.msra.mxu0 %v385
          %410 = vmatprep.subr.mxu0 0.0
          %411 = vmatpush1.msra.mxu0 %v386
          %412 = vmatprep.subr.mxu0 0.0
          %413 = vmatpush1.msra.mxu0 0.0
          %414 = vmatprep.subr.mxu0 0.0
          %415 = vmatpush1.msra.mxu0 0.0
          %416 = vmatprep.subr.mxu0 0.0
          %417 = vmatpush1.msra.mxu0 0.0
          %418 = vmatprep.subr.mxu0 0.0
          %419 = vmatpush1.msra.mxu0 0.0
          %420 = vmatprep.subr.mxu0 0.0
          %421 = vmatpush1.msra.mxu0 0.0
          %422 = vmatprep.subr.mxu0 0.0
          %423 = vmatpush1.msra.mxu0 0.0
          %424 = vmatprep.subr.mxu0 0.0
          %425 = vmatpush1.msra.mxu0 0.0
          %426 = vmatprep.subr.mxu0 0.0
          %427 = vmatpush1.msra.mxu0 0.0
          %428 = vmatprep.subr.mxu0 0.0
          %429 = vmatpush1.msra.mxu0 0.0
          %430 = vmatprep.subr.mxu0 0.0
          %431 = vmatpush1.msra.mxu0 0.0
          %432 = vmatprep.subr.mxu0 0.0
          %433 = vmatpush1.msra.mxu0 0.0
          %434 = vmatprep.subr.mxu0 0.0
          %435 = vmatpush1.msra.mxu0 0.0
          %436 = vmatprep.subr.mxu0 0.0
          %437 = vmatpush1.msra.mxu0 0.0
          %438 = vmatprep.subr.mxu0 0.0
          %439 = vmatpush1.msra.mxu0 0.0
          %440 = vmatprep.subr.mxu0 0.0
          %441 = vmatpush1.msra.mxu0 0.0
          %442 = vmatprep.subr.mxu0 0.0
          %443 = vmatpush1.msra.mxu0 0.0
          %444 = vmatprep.subr.mxu0 0.0
          %445 = vmatpush1.msra.mxu0 0.0
          %446 = vmatprep.subr.mxu0 0.0
          %447 = vmatpush1.msra.mxu0 0.0
          %448 = vmatprep.subr.mxu0 0.0
          %449 = vmatpush1.msra.mxu0 0.0
          %450 = vmatprep.subr.mxu0 0.0
          %451 = vmatpush1.msra.mxu0 0.0
          %452 = vmatprep.subr.mxu0 0.0
          %453 = vmatpush1.msra.mxu0 0.0
          %454 = vmatprep.subr.mxu0 0.0
          %455 = vmatpush1.msra.mxu0 0.0
          %456 = vmatprep.subr.mxu0 0.0
          %457 = vmatpush1.msra.mxu0 0.0
          %458 = vmatprep.subr.mxu0 0.0
          %459 = vmatpush1.msra.mxu0 0.0
          %460 = vmatprep.mubr.f32.mxu0 0.0
          %461 = vmatmul.mubr.f32.gmra.mrb[0].mxu0 %v388
          %v462 = vpop.f32.mrb[0].mxu0
          %v463 = vadd.f32 0.0, %v462
          %v464 = vpop.f32.mrb[0].mxu0
          %465 = vmatprep.mubr.f32.mxu0 0.0
          %466 = vmatmul.mubr.f32.gmra.mrb[0].mxu0 %v390
          %v467 = vpop.f32.mrb[0].mxu0
          %v468 = vadd.f32 0.0, %v467
          %v469 = vpop.f32.mrb[0].mxu0
          %470 = vmatprep.mubr.f32.mxu0 0.0
          %471 = vmatmul.mubr.f32.gmra.mrb[0].mxu0 %v392
          %v472 = vpop.f32.mrb[0].mxu0
          %v473 = vadd.f32 0.0, %v472
          %v474 = vpop.f32.mrb[0].mxu0
          %475 = vmatprep.mubr.f32.mxu0 0.0
          %476 = vmatmul.mubr.f32.gmra.mrb[0].mxu0 %v394
          %v477 = vpop.f32.mrb[0].mxu0
          %v478 = vadd.f32 0.0, %v477
          %v479 = vpop.f32.mrb[0].mxu0
          %480 = vdwg.mxu0
          %v481 = vsel %vm387, %v347, 0
          %v483 = vsel %vm387, %v348, 0
          %v485 = vsel %vm387, %v350, 0
          %v487 = vsel %vm387, %v351, 0
          %489 = vmatprep.subr.mxu0 0.0
          %490 = vmatpush1.msra.mxu0 %v353
          %491 = vmatprep.subr.mxu0 0.0
          %492 = vmatpush1.msra.mxu0 %v354
          %493 = vmatprep.subr.mxu0 0.0
          %494 = vmatpush1.msra.mxu0 %v355
          %495 = vmatprep.subr.mxu0 0.0
          %496 = vmatpush1.msra.mxu0 %v356
          %497 = vmatprep.subr.mxu0 0.0
          %498 = vmatpush1.msra.mxu0 %v357
          %499 = vmatprep.subr.mxu0 0.0
          %500 = vmatpush1.msra.mxu0 %v358
          %501 = vmatprep.subr.mxu0 0.0
          %502 = vmatpush1.msra.mxu0 %v359
          %503 = vmatprep.subr.mxu0 0.0
          %504 = vmatpush1.msra.mxu0 %v360
          %505 = vmatprep.subr.mxu0 0.0
          %506 = vmatpush1.msra.mxu0 0.0
          %507 = vmatprep.subr.mxu0 0.0
          %508 = vmatpush1.msra.mxu0 0.0
          %509 = vmatprep.subr.mxu0 0.0
          %510 = vmatpush1.msra.mxu0 0.0
          %511 = vmatprep.subr.mxu0 0.0
          %512 = vmatpush1.msra.mxu0 0.0
          %513 = vmatprep.subr.mxu0 0.0
          %514 = vmatpush1.msra.mxu0 0.0
          %515 = vmatprep.subr.mxu0 0.0
          %516 = vmatpush1.msra.mxu0 0.0
          %517 = vmatprep.subr.mxu0 0.0
          %518 = vmatpush1.msra.mxu0 0.0
          %519 = vmatprep.subr.mxu0 0.0
          %520 = vmatpush1.msra.mxu0 0.0
          %521 = vmatprep.subr.mxu0 0.0
          %522 = vmatpush1.msra.mxu0 0.0
          %523 = vmatprep.subr.mxu0 0.0
          %524 = vmatpush1.msra.mxu0 0.0
          %525 = vmatprep.subr.mxu0 0.0
          %526 = vmatpush1.msra.mxu0 0.0
          %527 = vmatprep.subr.mxu0 0.0
          %528 = vmatpush1.msra.mxu0 0.0
          %529 = vmatprep.subr.mxu0 0.0
          %530 = vmatpush1.msra.mxu0 0.0
          %531 = vmatprep.subr.mxu0 0.0
          %532 = vmatpush1.msra.mxu0 0.0
          %533 = vmatprep.subr.mxu0 0.0
          %534 = vmatpush1.msra.mxu0 0.0
          %535 = vmatprep.subr.mxu0 0.0
          %536 = vmatpush1.msra.mxu0 0.0
          %537 = vmatprep.subr.mxu0 0.0
          %538 = vmatpush1.msra.mxu0 0.0
          %539 = vmatprep.subr.mxu0 0.0
          %540 = vmatpush1.msra.mxu0 0.0
          %541 = vmatprep.subr.mxu0 0.0
          %542 = vmatpush1.msra.mxu0 0.0
          %543 = vmatprep.subr.mxu0 0.0
          %544 = vmatpush1.msra.mxu0 0.0
          %545 = vmatprep.subr.mxu0 0.0
          %546 = vmatpush1.msra.mxu0 0.0
          %547 = vmatprep.subr.mxu0 0.0
          %548 = vmatpush1.msra.mxu0 0.0
          %549 = vmatprep.subr.mxu0 0.0
          %550 = vmatpush1.msra.mxu0 0.0
          %551 = vmatprep.subr.mxu0 0.0
          %552 = vmatpush1.msra.mxu0 0.0
          %553 = vmatprep.mubr.f32.mxu0 0.0
          %554 = vmatmul.mubr.f32.gmra.mrb[0].mxu0 %v481
          %v555 = vpop.f32.mrb[0].mxu0
          %v556 = vadd.f32 %v463, %v555
          %v557 = vpop.f32.mrb[0].mxu0
          %558 = vmatprep.mubr.f32.mxu0 0.0
          %559 = vmatmul.mubr.f32.gmra.mrb[0].mxu0 %v483
          %v560 = vpop.f32.mrb[0].mxu0
          %v561 = vadd.f32 %v468, %v560
          %v562 = vpop.f32.mrb[0].mxu0
          %563 = vmatprep.mubr.f32.mxu0 0.0
          %564 = vmatmul.mubr.f32.gmra.mrb[0].mxu0 %v485
          %v565 = vpop.f32.mrb[0].mxu0
          %v566 = vadd.f32 %v473, %v565
          %v567 = vpop.f32.mrb[0].mxu0
          %568 = vmatprep.mubr.f32.mxu0 0.0
          %569 = vmatmul.mubr.f32.gmra.mrb[0].mxu0 %v487
          %v570 = vpop.f32.mrb[0].mxu0
          %v571 = vadd.f32 %v478, %v570
          %v572 = vpop.f32.mrb[0].mxu0
          %573 = vdwg.mxu0
          %vm574 = vcmask 1045504
          %v575 = vrot.slane %v347, 2
          %v576 = vrot.slane %v348, 2
          %v577 = vsel %vm574, %v575, %v576
          %v578 = vrot.slane %v349, 2
          %v579 = vsel %vm574, %v576, %v578
          %v580 = vrot.slane %v350, 2
          %v581 = vrot.slane %v351, 2
          %v582 = vsel %vm574, %v580, %v581
          %v583 = vrot.slane %v352, 2
          %v584 = vsel %vm574, %v581, %v583
          %s585 = scalar_lea.vmem [#allocation4], 128
          %v586 = vld [vmem:[%s585] sm:$0xff]
          %v587 = vld [vmem:[%s585 + $0x8] sm:$0xff]
          %v588 = vld [vmem:[%s585 + $0x10] sm:$0xff]
          %v589 = vld [vmem:[%s585 + $0x18] sm:$0xff]
          %v590 = vld [vmem:[%s585 + $0x20] sm:$0xff]
          %v591 = vld [vmem:[%s585 + $0x28] sm:$0xff]
          %v592 = vld [vmem:[%s585 + $0x30] sm:$0xff]
          %v593 = vld [vmem:[%s585 + $0x38] sm:$0xff]
          %v594 = vsel %vm387, %v577, 0
          %v596 = vsel %vm387, %v579, 0
          %v598 = vsel %vm387, %v582, 0
          %v600 = vsel %vm387, %v584, 0
          %602 = vmatprep.subr.mxu0 0.0
          %603 = vmatpush1.msra.mxu0 %v586
          %604 = vmatprep.subr.mxu0 0.0
          %605 = vmatpush1.msra.mxu0 %v587
          %606 = vmatprep.subr.mxu0 0.0
          %607 = vmatpush1.msra.mxu0 %v588
          %608 = vmatprep.subr.mxu0 0.0
          %609 = vmatpush1.msra.mxu0 %v589
          %610 = vmatprep.subr.mxu0 0.0
          %611 = vmatpush1.msra.mxu0 %v590
          %612 = vmatprep.subr.mxu0 0.0
          %613 = vmatpush1.msra.mxu0 %v591
          %614 = vmatprep.subr.mxu0 0.0
          %615 = vmatpush1.msra.mxu0 %v592
          %616 = vmatprep.subr.mxu0 0.0
          %617 = vmatpush1.msra.mxu0 %v593
          %618 = vmatprep.subr.mxu0 0.0
          %619 = vmatpush1.msra.mxu0 0.0
          %620 = vmatprep.subr.mxu0 0.0
          %621 = vmatpush1.msra.mxu0 0.0
          %622 = vmatprep.subr.mxu0 0.0
          %623 = vmatpush1.msra.mxu0 0.0
          %624 = vmatprep.subr.mxu0 0.0
          %625 = vmatpush1.msra.mxu0 0.0
          %626 = vmatprep.subr.mxu0 0.0
          %627 = vmatpush1.msra.mxu0 0.0
          %628 = vmatprep.subr.mxu0 0.0
          %629 = vmatpush1.msra.mxu0 0.0
          %630 = vmatprep.subr.mxu0 0.0
          %631 = vmatpush1.msra.mxu0 0.0
          %632 = vmatprep.subr.mxu0 0.0
          %633 = vmatpush1.msra.mxu0 0.0
          %634 = vmatprep.subr.mxu0 0.0
          %635 = vmatpush1.msra.mxu0 0.0
          %636 = vmatprep.subr.mxu0 0.0
          %637 = vmatpush1.msra.mxu0 0.0
          %638 = vmatprep.subr.mxu0 0.0
          %639 = vmatpush1.msra.mxu0 0.0
          %640 = vmatprep.subr.mxu0 0.0
          %641 = vmatpush1.msra.mxu0 0.0
          %642 = vmatprep.subr.mxu0 0.0
          %643 = vmatpush1.msra.mxu0 0.0
          %644 = vmatprep.subr.mxu0 0.0
          %645 = vmatpush1.msra.mxu0 0.0
          %646 = vmatprep.subr.mxu0 0.0
          %647 = vmatpush1.msra.mxu0 0.0
          %648 = vmatprep.subr.mxu0 0.0
          %649 = vmatpush1.msra.mxu0 0.0
          %650 = vmatprep.subr.mxu0 0.0
          %651 = vmatpush1.msra.mxu0 0.0
          %652 = vmatprep.subr.mxu0 0.0
          %653 = vmatpush1.msra.mxu0 0.0
          %654 = vmatprep.subr.mxu0 0.0
          %655 = vmatpush1.msra.mxu0 0.0
          %656 = vmatprep.subr.mxu0 0.0
          %657 = vmatpush1.msra.mxu0 0.0
          %658 = vmatprep.subr.mxu0 0.0
          %659 = vmatpush1.msra.mxu0 0.0
          %660 = vmatprep.subr.mxu0 0.0
          %661 = vmatpush1.msra.mxu0 0.0
          %662 = vmatprep.subr.mxu0 0.0
          %663 = vmatpush1.msra.mxu0 0.0
          %664 = vmatprep.subr.mxu0 0.0
          %665 = vmatpush1.msra.mxu0 0.0
          %666 = vmatprep.mubr.f32.mxu0 0.0
          %667 = vmatmul.mubr.f32.gmra.mrb[0].mxu0 %v594
          %v668 = vpop.f32.mrb[0].mxu0
          %v669 = vadd.f32 0.0, %v668
          %v670 = vpop.f32.mrb[0].mxu0
          %671 = vmatprep.mubr.f32.mxu0 0.0
          %672 = vmatmul.mubr.f32.gmra.mrb[0].mxu0 %v596
          %v673 = vpop.f32.mrb[0].mxu0
          %v674 = vadd.f32 0.0, %v673
          %v675 = vpop.f32.mrb[0].mxu0
          %676 = vmatprep.mubr.f32.mxu0 0.0
          %677 = vmatmul.mubr.f32.gmra.mrb[0].mxu0 %v598
          %v678 = vpop.f32.mrb[0].mxu0
          %v679 = vadd.f32 0.0, %v678
          %v680 = vpop.f32.mrb[0].mxu0
          %681 = vmatprep.mubr.f32.mxu0 0.0
          %682 = vmatmul.mubr.f32.gmra.mrb[0].mxu0 %v600
          %v683 = vpop.f32.mrb[0].mxu0
          %v684 = vadd.f32 0.0, %v683
          %v685 = vpop.f32.mrb[0].mxu0
          %686 = vdwg.mxu0
          %v687 = vadd.f32 %v556, %v669
          %v688 = vadd.f32 %v561, %v674
          %v689 = vadd.f32 %v566, %v679
          %v690 = vadd.f32 %v571, %v684
          %v691 = vld [vmem:[%s2] sm:$0x1]
          %v693 = vlaneseq
          %v694 = vshrl.u32 %v693, 7
          %v695 = vsub.s32 0, %v694
          %v696 = vrot.slane %v691, %v695
          %v698 = vadd.f32 %v687, %v696
          %v699 = vadd.f32 %v688, %v696
          %v700 = vadd.f32 %v689, %v696
          %v701 = vadd.f32 %v690, %v696
          %s702 = scalar_lea.vmem [#allocation2], %s342
          %703 = vst [vmem:[%s702] sm:$0xff] %v698
          %704 = vst [vmem:[%s702 + $0x8] sm:$0xff] %v699
          %705 = vst [vmem:[%s702 + $0x10] sm:$0xff] %v700
          %706 = vst [vmem:[%s702 + $0x18] sm:$0xff] %v701
        $region60: #{tpu_custom_call.1} parent=47 // pred_fallthru
          _
        %p707 = scmp.eq.s32.totalorder %s27, 1
        %p708 = scmp.eq.s32.totalorder %s28, 0
        %p709 = pnand %p707, %p708
        %p710 = pneg %p709
        // Predicated region
        $region61: #{tpu_custom_call.1} parent=47 // pred_check
          _
        $region62: #{tpu_custom_call.1} parent=47 // pred_check_branch
          %712 = sbr.rel (%p709) target = $region64
        $region63: #{tpu_custom_call.1} parent=47 // pred_region
          %v713 = vld [vmem:[#allocation2] sm:$0xff]
          %v714 = vld [vmem:[#allocation2 + $0x8] sm:$0xff]
          %v715 = vld [vmem:[#allocation2 + $0x10] sm:$0xff]
          %v716 = vld [vmem:[#allocation2 + $0x18] sm:$0xff]
          %v717 = vadd.f32 %v713, %v714
          %v718 = vadd.f32 %v717, %v715
          %v719 = vadd.f32 %v718, %v716
          %v720 = vrot.slane %v719, 4
          %v721 = vadd.f32 %v719, %v720
          %v722 = vrot.slane %v721, 2
          %v723 = vadd.f32 %v721, %v722
          %v724 = vrot.slane %v723, 1
          %v725 = vadd.f32 %v723, %v724
          %726 = vrot.lane.b32.xlu0 %v725, 64
          %v727 = vpop.permute.xlu0 %726
          %v728 = vadd.f32 %v725, %v727
          %729 = vrot.lane.b32.xlu0 %v728, 32
          %v730 = vpop.permute.xlu0 %729
          %v731 = vadd.f32 %v728, %v730
          %732 = vrot.lane.b32.xlu0 %v731, 16
          %v733 = vpop.permute.xlu0 %732
          %v734 = vadd.f32 %v731, %v733
          %735 = vrot.lane.b32.xlu0 %v734, 8
          %v736 = vpop.permute.xlu0 %735
          %v737 = vadd.f32 %v734, %v736
          %v738 = vmul.f32 %v737, 0.001953125
          %v739 = vlaneseq
          %v740 = vshrl.u32 %v739, 7
          %v741 = vsub.s32 0, %v740
          %v742 = vrot.slane %v738, %v741
          %v743 = vsub.f32 %v713, %v742
          %v744 = vsub.f32 %v714, %v742
          %v745 = vsub.f32 %v715, %v742
          %v746 = vsub.f32 %v716, %v742
          %v747 = vmul.f32 %v743, %v743
          %v748 = vmul.f32 %v744, %v744
          %v749 = vmul.f32 %v745, %v745
          %v750 = vmul.f32 %v746, %v746
          %v751 = vadd.f32 %v747, %v748
          %v752 = vadd.f32 %v751, %v749
          %v753 = vadd.f32 %v752, %v750
          %v754 = vrot.slane %v753, 4
          %v755 = vadd.f32 %v753, %v754
          %v756 = vrot.slane %v755, 2
          %v757 = vadd.f32 %v755, %v756
          %v758 = vrot.slane %v757, 1
          %v759 = vadd.f32 %v757, %v758
          %760 = vrot.lane.b32.xlu0 %v759, 64
          %v761 = vpop.permute.xlu0 %760
          %v762 = vadd.f32 %v759, %v761
          %763 = vrot.lane.b32.xlu0 %v762, 32
          %v764 = vpop.permute.xlu0 %763
          %v765 = vadd.f32 %v762, %v764
          %766 = vrot.lane.b32.xlu0 %v765, 16
          %v767 = vpop.permute.xlu0 %766
          %v768 = vadd.f32 %v765, %v767
          %769 = vrot.lane.b32.xlu0 %v768, 8
          %v770 = vpop.permute.xlu0 %769
          %v771 = vadd.f32 %v768, %v770
          %v772 = vmul.f32 %v771, 0.001953125
          %773 = vst [vmem:[#allocation3] sm:$0x1] %v738
          %v774 = vadd.f32 %v772, 1e-05
          %v775 = vrsqrt.pop %v774
          %776 = vst [vmem:[#allocation3 + $0x1] sm:$0x1] %v775
        $region64: #{tpu_custom_call.1} parent=47 // pred_fallthru
          _
        // Predicated region
        $region65: #{tpu_custom_call.1} parent=47 // pred_check
          %p777 = pneg %p707
        $region66: #{tpu_custom_call.1} parent=47 // pred_check_branch
          %779 = sbr.rel (%p777) target = $region68
        $region67: #{tpu_custom_call.1} parent=47 // pred_region
          %s780 = scalar_lea.vmem [#allocation2], %s342
          %v781 = vld [vmem:[%s780] sm:$0xff]
          %v782 = vld [vmem:[%s780 + $0x8] sm:$0xff]
          %v783 = vld [vmem:[%s780 + $0x10] sm:$0xff]
          %v784 = vld [vmem:[%s780 + $0x18] sm:$0xff]
          %v785 = vld [vmem:[#allocation3] sm:$0x1]
          %v786 = vld [vmem:[#allocation3 + $0x1] sm:$0x1]
          %v787 = vlaneseq
          %v788 = vshrl.u32 %v787, 7
          %v789 = vsub.s32 0, %v788
          %v790 = vrot.slane %v785, %v789
          %v791 = vsub.f32 %v781, %v790
          %v792 = vsub.f32 %v782, %v790
          %v793 = vsub.f32 %v783, %v790
          %v794 = vsub.f32 %v784, %v790
          %v795 = vlaneseq
          %v796 = vshrl.u32 %v795, 7
          %v797 = vsub.s32 0, %v796
          %v798 = vrot.slane %v786, %v797
          %v799 = vmul.f32 %v791, %v798
          %v800 = vmul.f32 %v792, %v798
          %v801 = vmul.f32 %v793, %v798
          %v802 = vmul.f32 %v794, %v798
          %v803 = vld [vmem:[%s3] sm:$0x1]
          %v805 = vlaneseq
          %v806 = vshrl.u32 %v805, 7
          %v807 = vsub.s32 0, %v806
          %v808 = vrot.slane %v803, %v807
          %v810 = vmul.f32 %v799, %v808
          %v811 = vmul.f32 %v800, %v808
          %v812 = vmul.f32 %v801, %v808
          %v813 = vmul.f32 %v802, %v808
          %v814 = vld [vmem:[%s4] sm:$0x1]
          %v816 = vlaneseq
          %v817 = vshrl.u32 %v816, 7
          %v818 = vsub.s32 0, %v817
          %v819 = vrot.slane %v814, %v818
          %v821 = vadd.f32 %v810, %v819
          %v822 = vadd.f32 %v811, %v819
          %v823 = vadd.f32 %v812, %v819
          %v824 = vadd.f32 %v813, %v819
          %v825 = vmul.f32 %v821, 0.5
          %v826 = vmul.f32 %v822, 0.5
          %v827 = vmul.f32 %v823, 0.5
          %v828 = vmul.f32 %v824, 0.5
          %v829 = vmul.f32 %v821, 0.70710677
          %v830 = vmul.f32 %v822, 0.70710677
          %v831 = vmul.f32 %v823, 0.70710677
          %v832 = vmul.f32 %v824, 0.70710677
          %v833 = verf.f32.pop %v829
          %v834 = verf.f32.pop %v830
          %v835 = verf.f32.pop %v831
          %v836 = verf.f32.pop %v832
          %v837 = vadd.f32 %v833, 1.0
          %v838 = vadd.f32 %v834, 1.0
          %v839 = vadd.f32 %v835, 1.0
          %v840 = vadd.f32 %v836, 1.0
          %v841 = vmul.f32 %v825, %v837
          %v842 = vmul.f32 %v826, %v838
          %v843 = vmul.f32 %v827, %v839
          %v844 = vmul.f32 %v828, %v840
          %v845 = vld [vmem:[#allocation7] sm:$0xff]
          %v846 = vld [vmem:[#allocation7 + $0x8] sm:$0xff]
          %v847 = vld [vmem:[#allocation7 + $0x10] sm:$0xff]
          %v848 = vld [vmem:[#allocation7 + $0x18] sm:$0xff]
          %v849 = vld [vmem:[#allocation7 + $0x20] sm:$0xff]
          %v850 = vld [vmem:[#allocation7 + $0x28] sm:$0xff]
          %v851 = vld [vmem:[#allocation7 + $0x30] sm:$0xff]
          %v852 = vld [vmem:[#allocation7 + $0x38] sm:$0xff]
          %v853 = vld [vmem:[#allocation7 + $0x40] sm:$0xff]
          %v854 = vld [vmem:[#allocation7 + $0x48] sm:$0xff]
          %v855 = vld [vmem:[#allocation7 + $0x50] sm:$0xff]
          %v856 = vld [vmem:[#allocation7 + $0x58] sm:$0xff]
          %v857 = vld [vmem:[#allocation7 + $0x60] sm:$0xff]
          %v858 = vld [vmem:[#allocation7 + $0x68] sm:$0xff]
          %v859 = vld [vmem:[#allocation7 + $0x70] sm:$0xff]
          %v860 = vld [vmem:[#allocation7 + $0x78] sm:$0xff]
          %v861 = vld [vmem:[%s6] sm:$0x1]
          %v863 = vlaneseq
          %v864 = vshrl.u32 %v863, 7
          %v865 = vsub.s32 0, %v864
          %v866 = vrot.slane %v861, %v865
          %868 = vmatprep.subr.mxu0 0.0
          %869 = vmatpush1.msra.mxu0 %v845
          %870 = vmatprep.subr.mxu0 0.0
          %871 = vmatpush1.msra.mxu0 %v846
          %872 = vmatprep.subr.mxu0 0.0
          %873 = vmatpush1.msra.mxu0 %v847
          %874 = vmatprep.subr.mxu0 0.0
          %875 = vmatpush1.msra.mxu0 %v848
          %876 = vmatprep.subr.mxu0 0.0
          %877 = vmatpush1.msra.mxu0 %v849
          %878 = vmatprep.subr.mxu0 0.0
          %879 = vmatpush1.msra.mxu0 %v850
          %880 = vmatprep.subr.mxu0 0.0
          %881 = vmatpush1.msra.mxu0 %v851
          %882 = vmatprep.subr.mxu0 0.0
          %883 = vmatpush1.msra.mxu0 %v852
          %884 = vmatprep.subr.mxu0 0.0
          %885 = vmatpush1.msra.mxu0 %v853
          %886 = vmatprep.subr.mxu0 0.0
          %887 = vmatpush1.msra.mxu0 %v854
          %888 = vmatprep.subr.mxu0 0.0
          %889 = vmatpush1.msra.mxu0 %v855
          %890 = vmatprep.subr.mxu0 0.0
          %891 = vmatpush1.msra.mxu0 %v856
          %892 = vmatprep.subr.mxu0 0.0
          %893 = vmatpush1.msra.mxu0 %v857
          %894 = vmatprep.subr.mxu0 0.0
          %895 = vmatpush1.msra.mxu0 %v858
          %896 = vmatprep.subr.mxu0 0.0
          %897 = vmatpush1.msra.mxu0 %v859
          %898 = vmatprep.subr.mxu0 0.0
          %899 = vmatpush1.msra.mxu0 %v860
          %900 = vmatprep.subr.mxu0 0.0
          %901 = vmatpush1.msra.mxu0 0.0
          %902 = vmatprep.subr.mxu0 0.0
          %903 = vmatpush1.msra.mxu0 0.0
          %904 = vmatprep.subr.mxu0 0.0
          %905 = vmatpush1.msra.mxu0 0.0
          %906 = vmatprep.subr.mxu0 0.0
          %907 = vmatpush1.msra.mxu0 0.0
          %908 = vmatprep.subr.mxu0 0.0
          %909 = vmatpush1.msra.mxu0 0.0
          %910 = vmatprep.subr.mxu0 0.0
          %911 = vmatpush1.msra.mxu0 0.0
          %912 = vmatprep.subr.mxu0 0.0
          %913 = vmatpush1.msra.mxu0 0.0
          %914 = vmatprep.subr.mxu0 0.0
          %915 = vmatpush1.msra.mxu0 0.0
          %916 = vmatprep.subr.mxu0 0.0
          %917 = vmatpush1.msra.mxu0 0.0
          %918 = vmatprep.subr.mxu0 0.0
          %919 = vmatpush1.msra.mxu0 0.0
          %920 = vmatprep.subr.mxu0 0.0
          %921 = vmatpush1.msra.mxu0 0.0
          %922 = vmatprep.subr.mxu0 0.0
          %923 = vmatpush1.msra.mxu0 0.0
          %924 = vmatprep.subr.mxu0 0.0
          %925 = vmatpush1.msra.mxu0 0.0
          %926 = vmatprep.subr.mxu0 0.0
          %927 = vmatpush1.msra.mxu0 0.0
          %928 = vmatprep.subr.mxu0 0.0
          %929 = vmatpush1.msra.mxu0 0.0
          %930 = vmatprep.subr.mxu0 0.0
          %931 = vmatpush1.msra.mxu0 0.0
          %932 = vmatprep.mubr.f32.mxu0 0.0
          %933 = vmatmul.mubr.f32.gmra.mrb[0].mxu0 %v841
          %v934 = vpop.f32.mrb[0].mxu0
          %v935 = vadd.f32 %v866, %v934
          %v936 = vpop.f32.mrb[0].mxu0
          %937 = vmatprep.mubr.f32.mxu0 0.0
          %938 = vmatmul.mubr.f32.gmra.mrb[0].mxu0 %v842
          %v939 = vpop.f32.mrb[0].mxu0
          %v940 = vadd.f32 %v866, %v939
          %v941 = vpop.f32.mrb[0].mxu0
          %942 = vmatprep.mubr.f32.mxu0 0.0
          %943 = vmatmul.mubr.f32.gmra.mrb[0].mxu0 %v843
          %v944 = vpop.f32.mrb[0].mxu0
          %v945 = vadd.f32 %v866, %v944
          %v946 = vpop.f32.mrb[0].mxu0
          %947 = vmatprep.mubr.f32.mxu0 0.0
          %948 = vmatmul.mubr.f32.gmra.mrb[0].mxu0 %v844
          %v949 = vpop.f32.mrb[0].mxu0
          %v950 = vadd.f32 %v866, %v949
          %v951 = vpop.f32.mrb[0].mxu0
          %952 = vdwg.mxu0
          %v953 = vxor.u32 %v935, 2147483648
          %v954 = vxor.u32 %v940, 2147483648
          %v955 = vxor.u32 %v945, 2147483648
          %v956 = vxor.u32 %v950, 2147483648
          %v957 = vmul.f32 %v953, 1.442695
          %v958 = vpow.pop %v957
          %v959 = vmul.f32 %v954, 1.442695
          %v960 = vpow.pop %v959
          %v961 = vmul.f32 %v955, 1.442695
          %v962 = vpow.pop %v961
          %v963 = vmul.f32 %v956, 1.442695
          %v964 = vpow.pop %v963
          %v965 = vadd.f32 %v958, 1.0
          %v966 = vadd.f32 %v960, 1.0
          %v967 = vadd.f32 %v962, 1.0
          %v968 = vadd.f32 %v964, 1.0
          %v969 = vrcp.pop %v965
          %v970 = vmul.f32 1.0, %v969
          %v971 = vrcp.pop %v966
          %v972 = vmul.f32 1.0, %v971
          %v973 = vrcp.pop %v967
          %v974 = vmul.f32 1.0, %v973
          %v975 = vrcp.pop %v968
          %v976 = vmul.f32 1.0, %v975
          %v977 = vmul.f32 %v970, %v841
          %v978 = vmul.f32 %v972, %v842
          %v979 = vmul.f32 %v974, %v843
          %v980 = vmul.f32 %v976, %v844
          %981 = vst [vmem:[%s328] sm:$0xff] %v977
          %982 = vst [vmem:[%s328 + $0x8] sm:$0xff] %v978
          %983 = vst [vmem:[%s328 + $0x10] sm:$0xff] %v979
          %984 = vst [vmem:[%s328 + $0x18] sm:$0xff] %v980
        $region68: #{tpu_custom_call.1} parent=47 // pred_fallthru
          _
        %s985 = sand.u32 %s201, 1
        %s986 = scalar_lea.sflag [#allocation6], %s985
        %s987 = sand.u32 %s201, 1
        %s988 = smul.addr %s987, 32
        %s989 = scalar_lea.vmem [#allocation9], %s988
        // Predicated region
        $region69: #{tpu_custom_call.1} parent=47 // pred_check
          %p990 = pneg %p211
        $region70: #{tpu_custom_call.1} parent=47 // pred_check_branch
          %992 = sbr.rel (%p990) target = $region72
        $region71: #{tpu_custom_call.1} parent=47 // pred_region
          %s993 = smul.u32 %s28, %s27
          %s994 = smul.u32 2, %s993
          %s996 = ssub.s32 512, 512
          %997 = vsyncadd %s986, %s996
          %s998 = smul.addr %s994, 2
          %s999 = smul.addr %s998, 128
          %s1000 = scalar_lea.hbm %s7, %s999
          %s1001 = sshll.u32 %s989, 4
          %s1002 = int_to_ptr.vmem [resolvable:$true] %s1001
          %1007 = dma.vmem_to_hbm [thread:$0]  %s1002, 512, %s1000, %s986, 128, 128, 8
        $region72: #{tpu_custom_call.1} parent=47 // pred_fallthru
          _
      $region48: #{tpu_custom_call.1} parent=5 // pred_fallthru
        _
      %p1008 = scmp.le.s32.totalorder 2, %s18
      // Predicated region
      $region73: #{tpu_custom_call.1} parent=5 // pred_check
        %p1009 = pneg %p1008
      $region74: #{tpu_custom_call.1} parent=5 // pred_check_branch
        %1011 = sbr.rel (%p1009) target = $region76
      $region75: #{tpu_custom_call.1} parent=5 // pred_region
        %s1012 = ssub.s32 %s18, 2
        // Predicated region
        $region77: #{tpu_custom_call.1} parent=75 // pred_check
          %p1013 = pneg %p217
        $region78: #{tpu_custom_call.1} parent=75 // pred_check_branch
          %1015 = sbr.rel (%p1013) target = $region80
        $region79: #{tpu_custom_call.1} parent=75 // pred_region
          %s1016 = sand.u32 %s202, 1
          %s1017 = scalar_lea.sflag [#allocation6], %s1016
          %s1018 = sand.u32 %s202, 1
          %s1019 = smul.addr %s1018, 32
          %s1020 = scalar_lea.vmem [#allocation9], %s1019
          %1021 = dma.done %s1017, 512
        $region80: #{tpu_custom_call.1} parent=75 // pred_fallthru
          _
      $region76: #{tpu_custom_call.1} parent=5 // pred_fallthru
        _
    $region6: #{tpu_custom_call.1} parent=1 // loop_footer
      %s22 = sadd.s32 1, %s18
    $region7: #{tpu_custom_call.1} parent=1 // loop_footer_branch
      %17 = sbr.rel target = $region3
    $region8: #{tpu_custom_call.1} parent=1 // loop_exit
      _
    %1022 = vsyncpa [#allocation5], 1
    %s1023 = scalar_lea.sflag [#allocation5], 1
    %1024 = vsyncpa %s1023, 1
    %1025 = vsyncpa [#allocation8], 1
    %1026 = vsyncpa [#allocation6], 1
    %s1027 = scalar_lea.sflag [#allocation6], 1
    %1028 = vsyncpa %s1027, 1

</llo_original>
